<compile_context>
chip_gen: v5e
topology: v5e:2x2
jax: 0.10.0
libtpu: 0.0.40
codegen_flags: <defaults>
</compile_context>

<pallas_src>
import jax
import jax.numpy as jnp
from jax.experimental import pallas as pl
from jax.experimental.pallas import tpu as pltpu

_LANE = 128
_SUBLANE = 8


def _round_up(n, m):
    return ((n + m - 1) // m) * m


def _cdiv(a, b):
    return -(-a // b)


def _softq_mlp_kernel(x_ref, p_ref, o_ref):
    """One batch tile through the 3-layer MLP.

    x_ref: [tile_b, nS]  f32 raw observations (no feature padding in HBM)
    p_ref: [ns_pad + 2F + 24, F] f32 packed params:
        rows [0, ns_pad)                = W1 (nS x H, zero-padded to ns_pad x F)
        rows [ns_pad, ns_pad + F)       = W2 (H x H,  zero-padded to F x F)
        rows [ns_pad + F, ns_pad + 2F)  = W3 (H x nA, zero-padded to F x F)
        row  ns_pad + 2F + 0            = b1 (each bias in an 8-row slot, row 0)
        row  ns_pad + 2F + 8            = b2
        row  ns_pad + 2F + 16           = b3
    o_ref: [tile_b, nA] f32 Q-values (no lane padding written back to HBM)
    """
    tile_b, nS = x_ref.shape
    rows, F = p_ref.shape
    nA = o_ref.shape[1]
    ns_pad = _round_up(nS, _SUBLANE)
    assert rows == ns_pad + 2 * F + 3 * _SUBLANE, "packed param layout mismatch"

    x = x_ref[...]

    w1 = p_ref[0:ns_pad, :]                      # rows >= nS are zero
    w2 = p_ref[ns_pad:ns_pad + F, :]
    w3 = p_ref[ns_pad + F:ns_pad + 2 * F, :]
    b_base = ns_pad + 2 * F
    b1 = p_ref[b_base + 0 * _SUBLANE:b_base + 0 * _SUBLANE + 1, :]
    b2 = p_ref[b_base + 1 * _SUBLANE:b_base + 1 * _SUBLANE + 1, :]
    b3 = p_ref[b_base + 2 * _SUBLANE:b_base + 2 * _SUBLANE + 1, :]

    # ---- Layer 1: Linear(nS, H) + ReLU ----
    if nS <= 32:
        # Tiny observation width: accumulate nS rank-1 VPU updates
        # (outer-product broadcasts). Avoids both an HBM-side K pad of x and an
        # MXU pass that would use only nS of its 128 contraction lanes.
        h1 = b1 + x[:, 0:1] * w1[0:1, :]
        for k in range(1, nS):
            h1 = h1 + x[:, k:k + 1] * w1[k:k + 1, :]
    else:
        # Wide observations: zero-extend x to the 8-aligned slab height in
        # VMEM (one cheap lane concat) and use the MXU.
        if ns_pad != nS:
            x = jnp.concatenate(
                [x, jnp.zeros((tile_b, ns_pad - nS), x.dtype)], axis=-1)
        h1 = jnp.dot(x, w1, preferred_element_type=jnp.float32) + b1
    h1 = jnp.maximum(h1, 0.0)

    # ---- Layer 2: Linear(H, H) + ReLU (full 128-aligned f32 MXU matmul) ----
    h2 = jnp.maximum(
        jnp.dot(h1, w2, preferred_element_type=jnp.float32) + b2, 0.0)

    # ---- Output layer: Linear(H, nA) ----
    q = jnp.dot(h2, w3, preferred_element_type=jnp.float32) + b3
    # Only the first nA lanes carry real Q-values; store just those so the HBM
    # writeback is [tile_b, nA] instead of a 128-wide slab.
    o_ref[...] = q[:, :nA].astype(o_ref.dtype)


def pack_params(params, nS, F):
    """Pack (w1,b1,w2,b2,w3,b3) into one [ns_pad + 2F + 24, F] f32 buffer.

    Weights are already transposed to (in_features, out_features); padded
    rows/cols/bias lanes are zero, so padded hidden lanes stay exactly zero
    through ReLU and padded output lanes are never stored.
    """
    w1, b1, w2, b2, w3, b3 = params
    ns_pad = _round_up(nS, _SUBLANE)

    def pad_w(w, n_rows):
        out = jnp.zeros((n_rows, F), jnp.float32)
        return out.at[:w.shape[0], :w.shape[1]].set(w)

    def pad_b(b):
        out = jnp.zeros((_SUBLANE, F), jnp.float32)   # 8-row-aligned slot
        return out.at[0, :b.shape[-1]].set(b.reshape(-1))

    return jnp.concatenate(
        [pad_w(w1, ns_pad), pad_w(w2, F), pad_w(w3, F),
         pad_b(b1), pad_b(b2), pad_b(b3)],
        axis=0,
    )


def _choose_batch_tiling(B):
    """Pick (tile_b, num_tiles) for the batch grid.

    Big tiles amortize the ~0.35 us per-grid-step overhead; for batches worth
    splitting we use an even number of evenly loaded tiles so that
    dimension_semantics=("parallel",) gives both v7x TensorCores real work
    (a no-op on single-TC v5e/v6e).
    """
    cap = 1024  # ~0.5 MiB per f32 activation buffer pair; far below any VMEM limit
    if B <= 256:
        return _round_up(max(B, 1), _SUBLANE), 1
    num_tiles = max(2, _cdiv(B, cap))
    num_tiles += num_tiles % 2           # even tile count -> balanced megacore split
    tile_b = _round_up(_cdiv(B, num_tiles), _SUBLANE)
    return tile_b, num_tiles


def softq_forward(x, packed_params, nA):
    """Q-network forward. x: [B, nS] float32 -> [B, nA] float32."""
    assert x.dtype == jnp.float32, "Input must be a float tensor."
    B, nS = x.shape
    P, F = packed_params.shape

    tile_b, num_tiles = _choose_batch_tiling(B)
    B_pad = tile_b * num_tiles
    if B_pad != B:
        # Batch-row padding only (a few zero rows of nS floats) -- the feature
        # and action dims are never padded in HBM.
        x = jnp.pad(x, ((0, B_pad - B), (0, 0)))

    out = pl.pallas_call(
        _softq_mlp_kernel,
        out_shape=jax.ShapeDtypeStruct((B_pad, nA), jnp.float32),
        grid=(num_tiles,),
        in_specs=[
            # Raw observations: one [tile_b, nS] tile per step (last dim equals
            # the full array dim, so the narrow block is legal); auto
            # double-buffered across the batch grid.
            pl.BlockSpec((tile_b, nS), lambda i: (i, 0)),
            # Packed params: constant block index -> DMA'd once, VMEM-resident
            # for the whole grid (~144 KiB).
            pl.BlockSpec((P, F), lambda i: (0, 0)),
        ],
        # Narrow [tile_b, nA] output block: no lane-padded writeback slab.
        out_specs=pl.BlockSpec((tile_b, nA), lambda i: (i, 0)),
        compiler_params=pltpu.CompilerParams(
            # Shard the batch axis across v7x's two TensorCores; no VMEM limit
            # override -- actual usage (<~4 MiB) is far below every
            # generation's default scoped limit.
            dimension_semantics=("parallel",),
        ),
    )(x, packed_params)

    return out[:B] if B_pad != B else out


def init_params(key, nS, hidden_dim, nA):
    """Deterministic init mimicking PyTorch Linear default U(-1/sqrt(fan_in), .).

    Weights are stored already transposed to (in_features, out_features).
    """
    def linear(key, fan_in, fan_out):
        kw, kb = jax.random.split(key)
        bound = 1.0 / jnp.sqrt(fan_in)
        w = jax.random.uniform(kw, (fan_in, fan_out), jnp.float32, -bound, bound)
        b = jax.random.uniform(kb, (1, fan_out), jnp.float32, -bound, bound)
        return w, b

    k1, k2, k3 = jax.random.split(key, 3)
    w1, b1 = linear(k1, nS, hidden_dim)
    w2, b2 = linear(k2, hidden_dim, hidden_dim)
    w3, b3 = linear(k3, hidden_dim, nA)
    return (w1, b1, w2, b2, w3, b3)


def _reference(x, params):
    w1, b1, w2, b2, w3, b3 = params
    h = jnp.maximum(x @ w1 + b1, 0.0)
    h = jnp.maximum(h @ w2 + b2, 0.0)
    return h @ w3 + b3


if __name__ == "__main__":
    # Small, CartPole-like setup: nS=4 observation features, nA=2 actions.
    B, nS, hidden_dim, nA = 8, 4, 32, 2

    key = jax.random.PRNGKey(0)
    k_params, k_x, k_x2 = jax.random.split(key, 3)
    params = init_params(k_params, nS, hidden_dim, nA)

    # Lane-dense width for the hidden/output feature axes of the packed params.
    F = _round_up(max(hidden_dim, nA), _LANE)
    packed = pack_params(params, nS, F)

    # --- Tiny batch (single grid step; action-selection path) ---
    x = jax.random.normal(k_x, (B, nS), jnp.float32)  # preprocess_obs ~ identity f32
    q = jax.block_until_ready(softq_forward(x, packed, nA))
    q_ref = _reference(x, params)
    assert q.shape == (B, nA)
    assert jnp.allclose(q, q_ref, atol=1e-5, rtol=1e-5)

    # --- Larger, non-aligned batch (exercises batch padding + the 2-tile
    # balanced split: B=300 -> 2 x 152 rows) ---
    B2 = 300
    x2 = jax.random.normal(k_x2, (B2, nS), jnp.float32)
    q2 = jax.block_until_ready(softq_forward(x2, packed, nA))
    q2_ref = _reference(x2, params)
    assert q2.shape == (B2, nA)
    assert jnp.allclose(q2, q2_ref, atol=1e-5, rtol=1e-5)

    print("KERNEL_OK")
</pallas_src>

<mosaic_0001>
module attributes {stable_mosaic.version = 11 : i64} {
  func.func @_softq_mlp_kernel(%arg0: i32, %arg1: memref<8x4xf32, #tpu.memory_space<vmem>>, %arg2: memref<288x128xf32, #tpu.memory_space<vmem>>, %arg3: memref<8x2xf32, #tpu.memory_space<vmem>>) attributes {dimension_semantics = [#tpu.dimension_semantics<parallel>], iteration_bounds = array<i64: 1>, scalar_prefetch = 0 : i64, scratch_operands = 0 : i64, tpu.core_type = #tpu.core_type<tc>, window_params = [{transform_indices = @transform_0, window_bounds = array<i64: 8, 4>}, {pipeline_mode = #tpu.pipeline_mode<synchronous>, transform_indices = @transform_1, window_bounds = array<i64: 288, 128>}, {transform_indices = @transform_2, window_bounds = array<i64: 8, 2>}]} {
    %c0 = arith.constant 0 : index
    %c0_0 = arith.constant 0 : index
    %0 = vector.load %arg1[%c0, %c0_0] : memref<8x4xf32, #tpu.memory_space<vmem>>, vector<8x4xf32>
    %c0_1 = arith.constant 0 : index
    %c0_2 = arith.constant 0 : index
    %1 = vector.load %arg2[%c0_1, %c0_2] : memref<288x128xf32, #tpu.memory_space<vmem>>, vector<8x128xf32>
    %c8 = arith.constant 8 : index
    %c0_3 = arith.constant 0 : index
    %2 = vector.load %arg2[%c8, %c0_3] : memref<288x128xf32, #tpu.memory_space<vmem>>, vector<128x128xf32>
    %c136 = arith.constant 136 : index
    %c0_4 = arith.constant 0 : index
    %3 = vector.load %arg2[%c136, %c0_4] : memref<288x128xf32, #tpu.memory_space<vmem>>, vector<128x128xf32>
    %c264 = arith.constant 264 : index
    %c0_5 = arith.constant 0 : index
    %4 = vector.load %arg2[%c264, %c0_5] : memref<288x128xf32, #tpu.memory_space<vmem>>, vector<1x128xf32>
    %c272 = arith.constant 272 : index
    %c0_6 = arith.constant 0 : index
    %5 = vector.load %arg2[%c272, %c0_6] : memref<288x128xf32, #tpu.memory_space<vmem>>, vector<1x128xf32>
    %c280 = arith.constant 280 : index
    %c0_7 = arith.constant 0 : index
    %6 = vector.load %arg2[%c280, %c0_7] : memref<288x128xf32, #tpu.memory_space<vmem>>, vector<1x128xf32>
    %7 = vector.extract_strided_slice %0 {offsets = [0, 0], sizes = [8, 1], strides = [1, 1]} : vector<8x4xf32> to vector<8x1xf32>
    %8 = vector.extract_strided_slice %1 {offsets = [0, 0], sizes = [1, 128], strides = [1, 1]} : vector<8x128xf32> to vector<1x128xf32>
    %9 = vector.broadcast %7 : vector<8x1xf32> to vector<8x128xf32>
    %10 = vector.broadcast %8 : vector<1x128xf32> to vector<8x128xf32>
    %11 = arith.mulf %9, %10 : vector<8x128xf32>
    %12 = vector.broadcast %4 : vector<1x128xf32> to vector<8x128xf32>
    %13 = arith.addf %12, %11 : vector<8x128xf32>
    %14 = vector.extract_strided_slice %0 {offsets = [0, 1], sizes = [8, 1], strides = [1, 1]} : vector<8x4xf32> to vector<8x1xf32>
    %15 = vector.extract_strided_slice %1 {offsets = [1, 0], sizes = [1, 128], strides = [1, 1]} : vector<8x128xf32> to vector<1x128xf32>
    %16 = vector.broadcast %14 : vector<8x1xf32> to vector<8x128xf32>
    %17 = vector.broadcast %15 : vector<1x128xf32> to vector<8x128xf32>
    %18 = arith.mulf %16, %17 : vector<8x128xf32>
    %19 = arith.addf %13, %18 : vector<8x128xf32>
    %20 = vector.extract_strided_slice %0 {offsets = [0, 2], sizes = [8, 1], strides = [1, 1]} : vector<8x4xf32> to vector<8x1xf32>
    %21 = vector.extract_strided_slice %1 {offsets = [2, 0], sizes = [1, 128], strides = [1, 1]} : vector<8x128xf32> to vector<1x128xf32>
    %22 = vector.broadcast %20 : vector<8x1xf32> to vector<8x128xf32>
    %23 = vector.broadcast %21 : vector<1x128xf32> to vector<8x128xf32>
    %24 = arith.mulf %22, %23 : vector<8x128xf32>
    %25 = arith.addf %19, %24 : vector<8x128xf32>
    %26 = vector.extract_strided_slice %0 {offsets = [0, 3], sizes = [8, 1], strides = [1, 1]} : vector<8x4xf32> to vector<8x1xf32>
    %27 = vector.extract_strided_slice %1 {offsets = [3, 0], sizes = [1, 128], strides = [1, 1]} : vector<8x128xf32> to vector<1x128xf32>
    %28 = vector.broadcast %26 : vector<8x1xf32> to vector<8x128xf32>
    %29 = vector.broadcast %27 : vector<1x128xf32> to vector<8x128xf32>
    %30 = arith.mulf %28, %29 : vector<8x128xf32>
    %31 = arith.addf %25, %30 : vector<8x128xf32>
    %cst = arith.constant 0.000000e+00 : f32
    %32 = vector.broadcast %cst : f32 to vector<8x128xf32>
    %33 = arith.maximumf %31, %32 : vector<8x128xf32>
    %cst_8 = arith.constant dense<0.000000e+00> : vector<8x128xf32>
    %34 = tpu.matmul %33, %2, %cst_8 {dimension_numbers = #tpu.dot_dimension_numbers<[1], [0], [0], [1], [0, 0, 1, 1], [], []>} : vector<8x128xf32>, vector<128x128xf32>, vector<8x128xf32> -> vector<8x128xf32>
    %35 = vector.broadcast %5 : vector<1x128xf32> to vector<8x128xf32>
    %36 = arith.addf %34, %35 : vector<8x128xf32>
    %cst_9 = arith.constant 0.000000e+00 : f32
    %37 = vector.broadcast %cst_9 : f32 to vector<8x128xf32>
    %38 = arith.maximumf %36, %37 : vector<8x128xf32>
    %cst_10 = arith.constant dense<0.000000e+00> : vector<8x128xf32>
    %39 = tpu.matmul %38, %3, %cst_10 {dimension_numbers = #tpu.dot_dimension_numbers<[1], [0], [0], [1], [0, 0, 1, 1], [], []>} : vector<8x128xf32>, vector<128x128xf32>, vector<8x128xf32> -> vector<8x128xf32>
    %40 = vector.broadcast %6 : vector<1x128xf32> to vector<8x128xf32>
    %41 = arith.addf %39, %40 : vector<8x128xf32>
    %42 = vector.extract_strided_slice %41 {offsets = [0, 0], sizes = [8, 2], strides = [1, 1]} : vector<8x128xf32> to vector<8x2xf32>
    %c0_11 = arith.constant 0 : index
    %c0_12 = arith.constant 0 : index
    %43 = vector.load %arg3[%c0_11, %c0_12] : memref<8x2xf32, #tpu.memory_space<vmem>>, vector<8x2xf32>
    tpu.vector_store %arg3[%c0_11, %c0_12], %42 {strides = array<i32>} : memref<8x2xf32, #tpu.memory_space<vmem>>, vector<8x2xf32>,
    return
  }
  func.func @transform_0(%arg0: i32) -> (i32, i32) {
    %c0_i32 = arith.constant 0 : i32
    %c0_i32_0 = arith.constant 0 : i32
    return %arg0, %c0_i32 : i32, i32
  }
  func.func @transform_1(%arg0: i32) -> (i32, i32) {
    %c0_i32 = arith.constant 0 : i32
    %c0_i32_0 = arith.constant 0 : i32
    %c0_i32_1 = arith.constant 0 : i32
    return %c0_i32, %c0_i32_0 : i32, i32
  }
  func.func @transform_2(%arg0: i32) -> (i32, i32) {
    %c0_i32 = arith.constant 0 : i32
    %c0_i32_0 = arith.constant 0 : i32
    return %arg0, %c0_i32 : i32, i32
  }
}

</mosaic_0001>

<llo_original>
// kernel: tpu_custom_call.1
$region0: #{tpu_custom_call.1}
  #allocation0 [shape = 'u32[]', space=smem, size = 0x4, offset = 0x4, fixed_abs, tag = 'smem constant byte address 0x4 - core index']
  #allocation1 [shape = 'u32[72,128]{1,0:T(1,128)}', space=vmem, size = 0x9000, scoped, tag = 'internal scratch']
  %s0 = inlined_call_operand.vmem [shape: f32[8,4], index: 0, kind: input, shape index: {}]
  %s1 = inlined_call_operand.hbm [shape: f32[288,128], index: 1, kind: input, shape index: {}]
  %s2 = inlined_call_operand.vmem [shape: f32[8,2], index: 2, kind: output, shape index: {}]
  %s3 = sld [smem:[#allocation0]]
  $region22: #{tpu_custom_call.1} parent=0
    _
  %s5 = ssub.s32 1, %s3
  %s6 = scalar_select 0, %s5, %s3
  $region1: #{tpu_custom_call.1} parent=0
    #allocation2 [shape = 'u8[147456]{0}', space=vmem, size = 0x24000, scoped, tag = 'input window, operand 1, single buffered']
    #allocation3 [shape = 's32[1]{0}', space=sflag, size = 0x4, scoped, tag = 'scoped memory for tpu_custom_call.1']
    %7 = vsyncpa [#allocation3], 0
    // Predicated region
    $region2: #{tpu_custom_call.1} parent=1 // pred_check
      _
    $region3: #{tpu_custom_call.1} parent=1 // pred_check_branch
      %9 = sbr.rel (0) target = $region5
    $region4: #{tpu_custom_call.1} parent=1 // pred_region
      _
    $region5: #{tpu_custom_call.1} parent=1 // pred_fallthru
      _
    // Predicated region
    $region6: #{tpu_custom_call.1} parent=1 // pred_check
      _
    $region7: #{tpu_custom_call.1} parent=1 // pred_check_branch
      %11 = sbr.rel (0) target = $region9
    $region8: #{tpu_custom_call.1} parent=1 // pred_region
      %13 = vsyncadd [#allocation3], 0
      %s14 = sshll.u32 %s1, 4
      %s15 = int_to_ptr.hbm [resolvable:$true] %s14
      %s16 = sshll.u32 [#allocation2], 4
      %s17 = int_to_ptr.vmem [resolvable:$true] %s16
      %22 = dma.hbm_to_vmem [thread:$0]  %s15, 4608, %s17, [#allocation3], 128, 128, 8
    $region9: #{tpu_custom_call.1} parent=1 // pred_fallthru
      _
    // Predicated region
    $region10: #{tpu_custom_call.1} parent=1 // pred_check
      _
    $region11: #{tpu_custom_call.1} parent=1 // pred_check_branch
      %24 = sbr.rel (0) target = $region13
    $region12: #{tpu_custom_call.1} parent=1 // pred_region
      %26 = dma.done [#allocation3], 4608
    $region13: #{tpu_custom_call.1} parent=1 // pred_fallthru
      _
    %v27 = vld [vmem:[%s0] sm:$0xff]
    %v28 = vld [vmem:[#allocation2] sm:$0xff]
    %v29 = vld [vmem:[#allocation2 + $0x8] sm:$0xff]
    %v30 = vld [vmem:[#allocation2 + $0x10] sm:$0xff]
    %v31 = vld [vmem:[#allocation2 + $0x18] sm:$0xff]
    %v32 = vld [vmem:[#allocation2 + $0x20] sm:$0xff]
    %v33 = vld [vmem:[#allocation2 + $0x28] sm:$0xff]
    %v34 = vld [vmem:[#allocation2 + $0x30] sm:$0xff]
    %v35 = vld [vmem:[#allocation2 + $0x38] sm:$0xff]
    %v36 = vld [vmem:[#allocation2 + $0x40] sm:$0xff]
    %v37 = vld [vmem:[#allocation2 + $0x48] sm:$0xff]
    %v38 = vld [vmem:[#allocation2 + $0x50] sm:$0xff]
    %v39 = vld [vmem:[#allocation2 + $0x58] sm:$0xff]
    %v40 = vld [vmem:[#allocation2 + $0x60] sm:$0xff]
    %v41 = vld [vmem:[#allocation2 + $0x68] sm:$0xff]
    %v42 = vld [vmem:[#allocation2 + $0x70] sm:$0xff]
    %v43 = vld [vmem:[#allocation2 + $0x78] sm:$0xff]
    %v44 = vld [vmem:[#allocation2 + $0x80] sm:$0xff]
    %v45 = vld [vmem:[#allocation2 + $0x88] sm:$0xff]
    %v46 = vld [vmem:[#allocation2 + $0x90] sm:$0xff]
    %v47 = vld [vmem:[#allocation2 + $0x98] sm:$0xff]
    %v48 = vld [vmem:[#allocation2 + $0xa0] sm:$0xff]
    %v49 = vld [vmem:[#allocation2 + $0xa8] sm:$0xff]
    %v50 = vld [vmem:[#allocation2 + $0xb0] sm:$0xff]
    %v51 = vld [vmem:[#allocation2 + $0xb8] sm:$0xff]
    %v52 = vld [vmem:[#allocation2 + $0xc0] sm:$0xff]
    %v53 = vld [vmem:[#allocation2 + $0xc8] sm:$0xff]
    %v54 = vld [vmem:[#allocation2 + $0xd0] sm:$0xff]
    %v55 = vld [vmem:[#allocation2 + $0xd8] sm:$0xff]
    %v56 = vld [vmem:[#allocation2 + $0xe0] sm:$0xff]
    %v57 = vld [vmem:[#allocation2 + $0xe8] sm:$0xff]
    %v58 = vld [vmem:[#allocation2 + $0xf0] sm:$0xff]
    %v59 = vld [vmem:[#allocation2 + $0xf8] sm:$0xff]
    %v60 = vld [vmem:[#allocation2 + $0x100] sm:$0xff]
    %v61 = vld [vmem:[#allocation2 + $0x108] sm:$0x1]
    %v62 = vld [vmem:[#allocation2 + $0x110] sm:$0x1]
    %v63 = vld [vmem:[#allocation2 + $0x118] sm:$0x1]
    %65 = vset.pattern.permute.xlu0 0
    %66 = vperm.xlu0 %65, %v27
    %v67 = vpop.permute.xlu0 %66
    %v69 = vperm.slane %v28, 0
    %v70 = vmul.f32 %v67, %v69
    %v71 = vperm.slane %v61, 0
    %v72 = vadd.f32 %v71, %v70
    %73 = vset.pattern.permute.xlu0 1
    %74 = vperm.xlu0 %73, %v27
    %v75 = vpop.permute.xlu0 %74
    %v77 = vperm.slane %v28, 1
    %v78 = vmul.f32 %v75, %v77
    %v79 = vadd.f32 %v72, %v78
    %80 = vset.pattern.permute.xlu0 2
    %81 = vperm.xlu0 %80, %v27
    %v82 = vpop.permute.xlu0 %81
    %v84 = vperm.slane %v28, 2
    %v85 = vmul.f32 %v82, %v84
    %v86 = vadd.f32 %v79, %v85
    %87 = vset.pattern.permute.xlu0 3
    %88 = vperm.xlu0 %87, %v27
    %v89 = vpop.permute.xlu0 %88
    %v91 = vperm.slane %v28, 3
    %v92 = vmul.f32 %v89, %v91
    %v93 = vadd.f32 %v86, %v92
    %v94 = vmax.f32 %v93, 0.0
    %v95 = vperm.slane %v62, 0
    %96 = vmatpush.msra.mxu0 %v44
    %97 = vmatpush.msra.mxu0 %v43
    %98 = vmatpush.msra.mxu0 %v42
    %99 = vmatpush.msra.mxu0 %v41
    %100 = vmatpush.msra.mxu0 %v40
    %101 = vmatpush.msra.mxu0 %v39
    %102 = vmatpush.msra.mxu0 %v38
    %103 = vmatpush.msra.mxu0 %v37
    %104 = vmatpush.msra.mxu0 %v36
    %105 = vmatpush.msra.mxu0 %v35
    %106 = vmatpush.msra.mxu0 %v34
    %107 = vmatpush.msra.mxu0 %v33
    %108 = vmatpush.msra.mxu0 %v32
    %109 = vmatpush.msra.mxu0 %v31
    %110 = vmatpush.msra.mxu0 %v30
    %111 = vmatpush.msra.mxu0 %v29
    %112 = vmatmul.f32.gmra.mxu0 %v94
    %v113 = vpop.f32.mrf.mxu0
    %v114 = vadd.f32 %v95, %v113
    %115 = vdwg.mxu0
    %v116 = vmax.f32 %v114, 0.0
    %v117 = vperm.slane %v63, 0
    %118 = vmatpush.msra.mxu0 %v60
    %119 = vmatpush.msra.mxu0 %v59
    %120 = vmatpush.msra.mxu0 %v58
    %121 = vmatpush.msra.mxu0 %v57
    %122 = vmatpush.msra.mxu0 %v56
    %123 = vmatpush.msra.mxu0 %v55
    %124 = vmatpush.msra.mxu0 %v54
    %125 = vmatpush.msra.mxu0 %v53
    %126 = vmatpush.msra.mxu0 %v52
    %127 = vmatpush.msra.mxu0 %v51
    %128 = vmatpush.msra.mxu0 %v50
    %129 = vmatpush.msra.mxu0 %v49
    %130 = vmatpush.msra.mxu0 %v48
    %131 = vmatpush.msra.mxu0 %v47
    %132 = vmatpush.msra.mxu0 %v46
    %133 = vmatpush.msra.mxu0 %v45
    %134 = vmatmul.f32.gmra.mxu0 %v116
    %v135 = vpop.f32.mrf.mxu0
    %v136 = vadd.f32 %v117, %v135
    %137 = vdwg.mxu0
    %vm138 = vcmask 15360
    %139 = vst.msk [vmem:[%s2] sm:$0xff] %vm138, %v136
    // Predicated region
    $region14: #{tpu_custom_call.1} parent=1 // pred_check
      _
    $region15: #{tpu_custom_call.1} parent=1 // pred_check_branch
      %141 = sbr.rel (0) target = $region17
    $region16: #{tpu_custom_call.1} parent=1 // pred_region
      _
    $region17: #{tpu_custom_call.1} parent=1 // pred_fallthru
      _
    // Predicated region
    $region18: #{tpu_custom_call.1} parent=1 // pred_check
      _
    $region19: #{tpu_custom_call.1} parent=1 // pred_check_branch
      %143 = sbr.rel (0) target = $region21
    $region20: #{tpu_custom_call.1} parent=1 // pred_region
      _
    $region21: #{tpu_custom_call.1} parent=1 // pred_fallthru
      _
    %144 = vsyncpa [#allocation3], 1

</llo_original>
